<compile_context>
chip_gen: v7x
topology: tpu7x:2x2x1
jax: 0.10.0
libtpu: 0.0.40
codegen_flags: <defaults>
</compile_context>

<pallas_src>
import numpy as np
import jax
import jax.numpy as jnp
from jax.experimental import pallas as pl
from jax.experimental.pallas import tpu as pltpu

KSIZE = 4                 # gaussian_weight_size in the PyTorch module
PAD = KSIZE // 2          # F.conv2d padding = 2
EPS = 0.1 / 255.0

_MIN_BLOCK_BYTES = 2 << 20      # don't shrink blocks below ~2 MiB just for step count


# --------------------------------------------------------------------------
# Kernel
# --------------------------------------------------------------------------
def _demosaic_kernel(w_ref, tile_ref, invd_ref, out_ref):
    """One (Pb, Ht, W) output block (Pb = nb images x C channels).

    tile_ref : (Pb, Ht+3, W+3)  padded rows for this H tile (3-row halo)
    invd_ref : (C,  Ht,  W)     1 / (conv4x4(cfa_mask) + eps); shared across
                                the nb images of the block (broadcast here)
    out = where(raw != 0, raw, conv4x4(raw) * inv_denom)
    matching F.conv2d(raw, w, padding=2, groups=C)[:, :, :H, :W] divided by
    (conv(mask, w) + eps), with known raw samples re-injected.
    """
    Pb, Ht, W = out_ref.shape
    C = invd_ref.shape[0]
    nb = Pb // C

    acc = jnp.zeros((Pb, Ht, W), jnp.float32)
    for i in range(KSIZE):
        row = tile_ref[:, i:i + Ht, :]              # one full-width load per tap row
        for j in range(KSIZE):
            acc = acc + row[:, :, j:j + W] * w_ref[i * KSIZE + j]
    # TODO(synk): generate the j-taps with pltpu.roll along the lane axis once
    # rotate direction / odd-width lowering is validated on the target libtpu;
    # value slices of the hoisted full-width row are used to keep lowering
    # robust at small/unaligned W.

    # (C,Ht,W) -> broadcast over the nb images via a leading-axis-only reshape
    # (layout-free: the last two dims are untouched).
    interp = (acc.reshape(nb, C, Ht, W) * invd_ref[...][None]).reshape(Pb, Ht, W)

    raw = tile_ref[:, PAD:PAD + Ht, PAD:PAD + W]    # unpadded raw, already in VMEM
    # NOTE(perf review): the PyTorch reference re-injects raw only where
    # `raw != 0` (not where mask == 1), so a sampled pixel whose value is
    # exactly 0 keeps its *interpolated* value.  We therefore keep the exact
    # where() form instead of folding (1-mask)*inv_denom; the compare+select
    # is VPU-cheap and the kernel stays HBM-bound.
    out_ref[...] = jnp.where(raw != 0.0, raw, interp)


# --------------------------------------------------------------------------
# Block / VMEM sizing
# --------------------------------------------------------------------------
_VMEM_CFG = None


def _vmem_config():
    """(block budget bytes, vmem_limit_bytes) - generation aware, cached."""
    global _VMEM_CFG
    if _VMEM_CFG is None:
        try:
            cap = int(pltpu.get_tpu_info().vmem_capacity_bytes)
        except Exception:
            cap = 64 << 20                      # conservative: v7x per-core VMEM
        cap = max(32 << 20, min(cap, 128 << 20))
        budget = min(int(cap * 0.40), 48 << 20)   # double-buffered block budget
        limit = min(int(cap * 0.75), 96 << 20)    # raised scoped-VMEM limit
        _VMEM_CFG = (budget, limit)
    return _VMEM_CFG


def _choose_tiling(N, C, H, W, budget_bytes):
    """Pick (nb images per block, Ht rows per block).

    Whole planes when they fit the budget; otherwise H is tiled in
    multiple-of-8 row chunks with a 3-row stencil halo.  Prefers >= 4 (even)
    total grid steps (v7x: 2 TensorCores; v5e/v6e: amortize the pipeline
    prologue/epilogue) without dropping below ~2 MiB per block.
    """
    Wp = W + KSIZE - 1

    def blk_bytes(nb, Ht):
        Pb = nb * C
        return 4 * (2 * Pb * (Ht + KSIZE - 1) * Wp   # input slab (double-buffered)
                    + 2 * Pb * Ht * W                # output     (double-buffered)
                    + 2 * C * Ht * W)                # inv_denom  (double-buffered)

    def nsteps(nb, Ht):
        return (N // nb) * (H // Ht)

    h_divs = [d for d in range(1, H + 1) if H % d == 0]
    h_cands = [d for d in h_divs if d % 8 == 0] or h_divs

    # Pass 1: whole-plane blocks.
    nb_fit = [d for d in range(1, N + 1) if N % d == 0
              and blk_bytes(d, H) <= budget_bytes]
    if nb_fit:
        nb_desc = sorted(nb_fit, reverse=True)
        nb = nb_desc[0]
        for ok in (lambda d: nsteps(d, H) >= 4 and nsteps(d, H) % 2 == 0,
                   lambda d: nsteps(d, H) >= 2,
                   lambda d: True):
            cand = [d for d in nb_desc if ok(d)]
            if cand:
                nb = cand[0]
                break
        Ht = H
        if nsteps(nb, H) < 4:
            good = [t for t in sorted(h_cands, reverse=True)
                    if t < H and nsteps(nb, t) >= 4
                    and blk_bytes(nb, t) >= _MIN_BLOCK_BYTES]
            even = [t for t in good if nsteps(nb, t) % 2 == 0]
            if even or good:
                Ht = (even or good)[0]
        return nb, Ht

    # Pass 2: one image per block + H tiling with a 3-row halo.
    fit_h = [t for t in h_cands if blk_bytes(1, t) <= budget_bytes]
    Ht = max(fit_h) if fit_h else min(h_cands)
    return 1, Ht


# --------------------------------------------------------------------------
# Wrappers
# --------------------------------------------------------------------------
def _conv4x4(planes, weight):
    """Cross-correlation of (K,H,W) planes with the 4x4 weight; matches
    F.conv2d(x, w, padding=2, groups=K)[:, :, :H, :W]."""
    K, H, W = planes.shape
    xp = jnp.pad(planes, ((0, 0), (PAD, KSIZE - 1 - PAD), (PAD, KSIZE - 1 - PAD)))
    acc = jnp.zeros((K, H, W), jnp.float32)
    for i in range(KSIZE):
        for j in range(KSIZE):
            acc = acc + xp[:, i:i + H, j:j + W] * weight[i, j]
    return acc


def demosaic(raw, inv_denom, weight, *, tiling=None):
    """raw: (P, H, W) f32 planes ordered (n, c); inv_denom: (C, H, W) f32;
    weight: (4, 4) f32.  Returns (P, H, W) f32."""
    P, H, W = raw.shape
    C = inv_denom.shape[0]
    N = P // C
    budget, vmem_limit = _vmem_config()
    nb, Ht = tiling if tiling is not None else _choose_tiling(N, C, H, W, budget)
    Pb = nb * C
    assert P % Pb == 0 and H % Ht == 0
    nH = H // Ht
    Wp = W + KSIZE - 1
    Hin = Ht + KSIZE - 1

    # F.conv2d(pad=2) then crop [:H,:W] == valid conv over the input padded
    # 2 on top/left and 1 on bottom/right.
    raw_pad = jnp.pad(raw, ((0, 0), (PAD, KSIZE - 1 - PAD), (PAD, KSIZE - 1 - PAD)))
    if nH == 1:
        tiles = raw_pad[None]                        # (1, P, H+3, W+3), reshape only
    else:
        # Overlapping (Ht+3)-row slabs: ~3/Ht extra HBM reads, but every
        # BlockSpec stays on plain Blocked indexing (no halo overlap games).
        tiles = jnp.stack(
            [raw_pad[:, h * Ht:h * Ht + Hin, :] for h in range(nH)], axis=0)
    # TODO(synk): drop the wrapper pad / slab materialization by handling the
    # 2/1-row boundary in-kernel (pl.Element halo windows or manual
    # make_async_copy) so the kernel reads the unpadded planes directly.
    # TODO(synk): for deployments where W is not a multiple of 128, pad W up
    # to the next 128 multiple in the wrapper for lane-dense stores (typical
    # sensor widths 1280/1920 already are).

    w_flat = weight.reshape(KSIZE * KSIZE).astype(jnp.float32)   # (16,) in SMEM
    inv_denom = inv_denom.astype(jnp.float32)

    return pl.pallas_call(
        _demosaic_kernel,
        out_shape=jax.ShapeDtypeStruct((P, H, W), jnp.float32),
        grid=(P // Pb, nH),
        in_specs=[
            pl.BlockSpec(memory_space=pltpu.MemorySpace.SMEM),           # 4x4 weight
            pl.BlockSpec((None, Pb, Hin, Wp), lambda p, h: (h, p, 0, 0)),  # halo slab
            pl.BlockSpec((C, Ht, W), lambda p, h: (0, h, 0)),            # inv_denom
        ],
        out_specs=pl.BlockSpec((Pb, Ht, W), lambda p, h: (p, h, 0)),
        compiler_params=pltpu.CompilerParams(
            dimension_semantics=("parallel", "parallel"),
            vmem_limit_bytes=vmem_limit),
    )(w_flat, tiles, inv_denom)


def _cfa_masks_rgb(H, W):
    m0 = np.zeros((H, W), np.float32)
    m1 = np.zeros((H, W), np.float32)
    m2 = np.zeros((H, W), np.float32)
    m0[0::2, 0::2] = 1; m0[2::4, 3::4] = 1; m0[3::4, 2::4] = 1
    m1[0::4, 3::4] = 1; m1[1::4, 2::4] = 1; m1[2::4, 1::4] = 1; m1[3::4, 0::4] = 1
    m2[0::4, 1::4] = 1; m2[1::4, 0::4] = 1
    return np.stack([m0, m1, m2], axis=0)          # (3, H, W)


def _mosaic_mask_w(H, W):
    m = np.zeros((H, W), np.float32)
    m[::2, ::2] = 1
    m[1::2, 1::2] = 1
    return m[None]                                 # (1, H, W)


def rgb_to_rgbmask(imgs, weight, *, tiling=None):
    """imgs: (N, 3, H, W) -> (N, 3, H, W)"""
    N, C, H, W = imgs.shape
    cfa = jnp.asarray(_cfa_masks_rgb(H, W))                       # (3, H, W)
    raw = ((imgs * cfa[None]) / 3.0).astype(jnp.float32).reshape(N * C, H, W)
    inv_denom = 1.0 / (_conv4x4(cfa, weight) + EPS)               # (3, H, W), tiny
    out = demosaic(raw, inv_denom, weight, tiling=tiling)
    return out.reshape(N, C, H, W)


def rgb_to_w(imgs, weight, *, tiling=None):
    """imgs: (N, 3, H, W) -> (N, 1, H, W).  Unused while the backbone is an
    identity pass-through (feats[:, 0:3] discards the W channel)."""
    N, _, H, W = imgs.shape
    w = imgs[:, 0] / 3.0 + imgs[:, 1] / 3.0 + imgs[:, 2] / 3.0    # (N, H, W)
    mos = jnp.asarray(_mosaic_mask_w(H, W))                       # (1, H, W)
    raw = (w * mos).astype(jnp.float32)                           # (N, H, W)
    inv_denom = 1.0 / (_conv4x4(mos, weight) + EPS)               # (1, H, W)
    out = demosaic(raw, inv_denom, weight, tiling=tiling)
    return out[:, None]                                           # (N, 1, H, W)


def new_crf_depth_forward(rgbw_data, w_rgb, w_w=None):
    """Reproduces NewCRFDepth.forward.  rgbw_data: (N, 3, H, W) float32."""
    img_mask = rgb_to_rgbmask(rgbw_data, w_rgb)      # (N, 3, H, W)
    # TODO(synk): FSNet/Restormer backbone class is not defined in the provided
    # source, so it is an identity pass-through; feats[:, 0:3] == img_MASK, so
    # the W path + concat are skipped unless w_w is supplied (re-enable when
    # the real backbone exists).
    if w_w is not None:
        w = rgb_to_w(rgbw_data, w_w)                 # (N, 1, H, W)
        rgbw = jnp.concatenate([img_mask, w], axis=1)
        feats = rgbw                                 # identity backbone
        return feats[:, 0:3]
    return img_mask


# --------------------------------------------------------------------------
# Pure-JAX reference (direct transcription of NewCRFDepth.gaussian)
# --------------------------------------------------------------------------
def _gaussian_ref(raw_planes, mask, weight):
    P = raw_planes.shape[0]
    C = mask.shape[0]
    num = _conv4x4(raw_planes, weight)
    den = jnp.tile(_conv4x4(mask, weight) + EPS, (P // C, 1, 1))
    return jnp.where(raw_planes != 0.0, raw_planes, num / den)


def _rgbmask_reference(imgs, weight):
    N, C, H, W = imgs.shape
    cfa = jnp.asarray(_cfa_masks_rgb(H, W))
    raw = ((imgs * cfa[None]) / 3.0).reshape(N * C, H, W)
    return _gaussian_ref(raw, cfa, weight).reshape(N, C, H, W)


if __name__ == "__main__":
    key = jax.random.PRNGKey(0)
    k_w, k_x, k_x2 = jax.random.split(key, 3)

    # torch.normal(mean=1, std=gaussian_weight_size/8=0.5, size=(4,4))
    w_rgb = 1.0 + 0.5 * jax.random.normal(k_w, (KSIZE, KSIZE), jnp.float32)
    rgbw_data = jax.random.uniform(k_x, (2, 3, 16, 16), jnp.float32)

    # 1) default path (whole-plane blocks)
    out = jax.block_until_ready(jax.jit(new_crf_depth_forward)(rgbw_data, w_rgb))
    assert out.shape == (2, 3, 16, 16) and out.dtype == jnp.float32
    ref = _rgbmask_reference(rgbw_data, w_rgb)
    assert jnp.allclose(out, ref, rtol=5e-5, atol=1e-5), \
        float(jnp.max(jnp.abs(out - ref)))

    # 2) H-halo tiled path (4 row tiles, lane-dense W=128)
    x2 = jax.random.uniform(k_x2, (2, 3, 64, 128), jnp.float32)
    out2 = jax.block_until_ready(rgb_to_rgbmask(x2, w_rgb, tiling=(1, 16)))
    ref2 = _rgbmask_reference(x2, w_rgb)
    assert jnp.allclose(out2, ref2, rtol=5e-5, atol=1e-5), \
        float(jnp.max(jnp.abs(out2 - ref2)))

    # 3) full forward with the (dead, identity-backbone) W path
    out3 = jax.block_until_ready(new_crf_depth_forward(rgbw_data, w_rgb, w_w=w_rgb))
    assert out3.shape == (2, 3, 16, 16)
    assert jnp.allclose(out3, out, rtol=1e-6, atol=1e-6)

    print("KERNEL_OK")
</pallas_src>

<mosaic_0001>
module attributes {stable_mosaic.version = 11 : i64} {
  func.func @_demosaic_kernel(%arg0: i32, %arg1: i32, %arg2: memref<16xf32, #tpu.memory_space<smem>>, %arg3: memref<1x3x19x19xf32, #tpu.memory_space<vmem>>, %arg4: memref<3x16x16xf32, #tpu.memory_space<vmem>>, %arg5: memref<3x16x16xf32, #tpu.memory_space<vmem>>) attributes {dimension_semantics = [#tpu.dimension_semantics<parallel>, #tpu.dimension_semantics<parallel>], iteration_bounds = array<i64: 2, 1>, scalar_prefetch = 0 : i64, scratch_operands = 0 : i64, tpu.core_type = #tpu.core_type<tc>, window_params = [{transform_indices = @transform_0, window_bounds = array<i64: 16>}, {transform_indices = @transform_1, window_bounds = array<i64: 1, 3, 19, 19>}, {transform_indices = @transform_2, window_bounds = array<i64: 3, 16, 16>}, {transform_indices = @transform_3, window_bounds = array<i64: 3, 16, 16>}]} {
    %cst = arith.constant 0.000000e+00 : f32
    %0 = vector.broadcast %cst : f32 to vector<3x16x16xf32>
    %c0 = arith.constant 0 : index
    %c0_0 = arith.constant 0 : index
    %c0_1 = arith.constant 0 : index
    %c0_2 = arith.constant 0 : index
    %1 = vector.load %arg3[%c0, %c0_0, %c0_1, %c0_2] : memref<1x3x19x19xf32, #tpu.memory_space<vmem>>, vector<1x3x16x19xf32>
    %2 = vector.shape_cast %1 : vector<1x3x16x19xf32> to vector<3x16x19xf32>
    %3 = vector.extract_strided_slice %2 {offsets = [0, 0, 0], sizes = [3, 16, 16], strides = [1, 1, 1]} : vector<3x16x19xf32> to vector<3x16x16xf32>
    %c0_3 = arith.constant 0 : index
    %4 = memref.load %arg2[%c0_3] : memref<16xf32, #tpu.memory_space<smem>>
    %5 = vector.broadcast %4 : f32 to vector<3x16x16xf32>
    %6 = arith.mulf %3, %5 : vector<3x16x16xf32>
    %7 = arith.addf %0, %6 : vector<3x16x16xf32>
    %8 = vector.extract_strided_slice %2 {offsets = [0, 0, 1], sizes = [3, 16, 16], strides = [1, 1, 1]} : vector<3x16x19xf32> to vector<3x16x16xf32>
    %c1 = arith.constant 1 : index
    %9 = memref.load %arg2[%c1] : memref<16xf32, #tpu.memory_space<smem>>
    %10 = vector.broadcast %9 : f32 to vector<3x16x16xf32>
    %11 = arith.mulf %8, %10 : vector<3x16x16xf32>
    %12 = arith.addf %7, %11 : vector<3x16x16xf32>
    %13 = vector.extract_strided_slice %2 {offsets = [0, 0, 2], sizes = [3, 16, 16], strides = [1, 1, 1]} : vector<3x16x19xf32> to vector<3x16x16xf32>
    %c2 = arith.constant 2 : index
    %14 = memref.load %arg2[%c2] : memref<16xf32, #tpu.memory_space<smem>>
    %15 = vector.broadcast %14 : f32 to vector<3x16x16xf32>
    %16 = arith.mulf %13, %15 : vector<3x16x16xf32>
    %17 = arith.addf %12, %16 : vector<3x16x16xf32>
    %18 = vector.extract_strided_slice %2 {offsets = [0, 0, 3], sizes = [3, 16, 16], strides = [1, 1, 1]} : vector<3x16x19xf32> to vector<3x16x16xf32>
    %c3 = arith.constant 3 : index
    %19 = memref.load %arg2[%c3] : memref<16xf32, #tpu.memory_space<smem>>
    %20 = vector.broadcast %19 : f32 to vector<3x16x16xf32>
    %21 = arith.mulf %18, %20 : vector<3x16x16xf32>
    %22 = arith.addf %17, %21 : vector<3x16x16xf32>
    %c0_4 = arith.constant 0 : index
    %c0_5 = arith.constant 0 : index
    %c1_6 = arith.constant 1 : index
    %c0_7 = arith.constant 0 : index
    %23 = vector.load %arg3[%c0_4, %c0_5, %c1_6, %c0_7] : memref<1x3x19x19xf32, #tpu.memory_space<vmem>>, vector<1x3x16x19xf32>
    %24 = vector.shape_cast %23 : vector<1x3x16x19xf32> to vector<3x16x19xf32>
    %25 = vector.extract_strided_slice %24 {offsets = [0, 0, 0], sizes = [3, 16, 16], strides = [1, 1, 1]} : vector<3x16x19xf32> to vector<3x16x16xf32>
    %c4 = arith.constant 4 : index
    %26 = memref.load %arg2[%c4] : memref<16xf32, #tpu.memory_space<smem>>
    %27 = vector.broadcast %26 : f32 to vector<3x16x16xf32>
    %28 = arith.mulf %25, %27 : vector<3x16x16xf32>
    %29 = arith.addf %22, %28 : vector<3x16x16xf32>
    %30 = vector.extract_strided_slice %24 {offsets = [0, 0, 1], sizes = [3, 16, 16], strides = [1, 1, 1]} : vector<3x16x19xf32> to vector<3x16x16xf32>
    %c5 = arith.constant 5 : index
    %31 = memref.load %arg2[%c5] : memref<16xf32, #tpu.memory_space<smem>>
    %32 = vector.broadcast %31 : f32 to vector<3x16x16xf32>
    %33 = arith.mulf %30, %32 : vector<3x16x16xf32>
    %34 = arith.addf %29, %33 : vector<3x16x16xf32>
    %35 = vector.extract_strided_slice %24 {offsets = [0, 0, 2], sizes = [3, 16, 16], strides = [1, 1, 1]} : vector<3x16x19xf32> to vector<3x16x16xf32>
    %c6 = arith.constant 6 : index
    %36 = memref.load %arg2[%c6] : memref<16xf32, #tpu.memory_space<smem>>
    %37 = vector.broadcast %36 : f32 to vector<3x16x16xf32>
    %38 = arith.mulf %35, %37 : vector<3x16x16xf32>
    %39 = arith.addf %34, %38 : vector<3x16x16xf32>
    %40 = vector.extract_strided_slice %24 {offsets = [0, 0, 3], sizes = [3, 16, 16], strides = [1, 1, 1]} : vector<3x16x19xf32> to vector<3x16x16xf32>
    %c7 = arith.constant 7 : index
    %41 = memref.load %arg2[%c7] : memref<16xf32, #tpu.memory_space<smem>>
    %42 = vector.broadcast %41 : f32 to vector<3x16x16xf32>
    %43 = arith.mulf %40, %42 : vector<3x16x16xf32>
    %44 = arith.addf %39, %43 : vector<3x16x16xf32>
    %c0_8 = arith.constant 0 : index
    %c0_9 = arith.constant 0 : index
    %c2_10 = arith.constant 2 : index
    %c0_11 = arith.constant 0 : index
    %45 = vector.load %arg3[%c0_8, %c0_9, %c2_10, %c0_11] : memref<1x3x19x19xf32, #tpu.memory_space<vmem>>, vector<1x3x16x19xf32>
    %46 = vector.shape_cast %45 : vector<1x3x16x19xf32> to vector<3x16x19xf32>
    %47 = vector.extract_strided_slice %46 {offsets = [0, 0, 0], sizes = [3, 16, 16], strides = [1, 1, 1]} : vector<3x16x19xf32> to vector<3x16x16xf32>
    %c8 = arith.constant 8 : index
    %48 = memref.load %arg2[%c8] : memref<16xf32, #tpu.memory_space<smem>>
    %49 = vector.broadcast %48 : f32 to vector<3x16x16xf32>
    %50 = arith.mulf %47, %49 : vector<3x16x16xf32>
    %51 = arith.addf %44, %50 : vector<3x16x16xf32>
    %52 = vector.extract_strided_slice %46 {offsets = [0, 0, 1], sizes = [3, 16, 16], strides = [1, 1, 1]} : vector<3x16x19xf32> to vector<3x16x16xf32>
    %c9 = arith.constant 9 : index
    %53 = memref.load %arg2[%c9] : memref<16xf32, #tpu.memory_space<smem>>
    %54 = vector.broadcast %53 : f32 to vector<3x16x16xf32>
    %55 = arith.mulf %52, %54 : vector<3x16x16xf32>
    %56 = arith.addf %51, %55 : vector<3x16x16xf32>
    %57 = vector.extract_strided_slice %46 {offsets = [0, 0, 2], sizes = [3, 16, 16], strides = [1, 1, 1]} : vector<3x16x19xf32> to vector<3x16x16xf32>
    %c10 = arith.constant 10 : index
    %58 = memref.load %arg2[%c10] : memref<16xf32, #tpu.memory_space<smem>>
    %59 = vector.broadcast %58 : f32 to vector<3x16x16xf32>
    %60 = arith.mulf %57, %59 : vector<3x16x16xf32>
    %61 = arith.addf %56, %60 : vector<3x16x16xf32>
    %62 = vector.extract_strided_slice %46 {offsets = [0, 0, 3], sizes = [3, 16, 16], strides = [1, 1, 1]} : vector<3x16x19xf32> to vector<3x16x16xf32>
    %c11 = arith.constant 11 : index
    %63 = memref.load %arg2[%c11] : memref<16xf32, #tpu.memory_space<smem>>
    %64 = vector.broadcast %63 : f32 to vector<3x16x16xf32>
    %65 = arith.mulf %62, %64 : vector<3x16x16xf32>
    %66 = arith.addf %61, %65 : vector<3x16x16xf32>
    %c0_12 = arith.constant 0 : index
    %c0_13 = arith.constant 0 : index
    %c3_14 = arith.constant 3 : index
    %c0_15 = arith.constant 0 : index
    %67 = vector.load %arg3[%c0_12, %c0_13, %c3_14, %c0_15] : memref<1x3x19x19xf32, #tpu.memory_space<vmem>>, vector<1x3x16x19xf32>
    %68 = vector.shape_cast %67 : vector<1x3x16x19xf32> to vector<3x16x19xf32>
    %69 = vector.extract_strided_slice %68 {offsets = [0, 0, 0], sizes = [3, 16, 16], strides = [1, 1, 1]} : vector<3x16x19xf32> to vector<3x16x16xf32>
    %c12 = arith.constant 12 : index
    %70 = memref.load %arg2[%c12] : memref<16xf32, #tpu.memory_space<smem>>
    %71 = vector.broadcast %70 : f32 to vector<3x16x16xf32>
    %72 = arith.mulf %69, %71 : vector<3x16x16xf32>
    %73 = arith.addf %66, %72 : vector<3x16x16xf32>
    %74 = vector.extract_strided_slice %68 {offsets = [0, 0, 1], sizes = [3, 16, 16], strides = [1, 1, 1]} : vector<3x16x19xf32> to vector<3x16x16xf32>
    %c13 = arith.constant 13 : index
    %75 = memref.load %arg2[%c13] : memref<16xf32, #tpu.memory_space<smem>>
    %76 = vector.broadcast %75 : f32 to vector<3x16x16xf32>
    %77 = arith.mulf %74, %76 : vector<3x16x16xf32>
    %78 = arith.addf %73, %77 : vector<3x16x16xf32>
    %79 = vector.extract_strided_slice %68 {offsets = [0, 0, 2], sizes = [3, 16, 16], strides = [1, 1, 1]} : vector<3x16x19xf32> to vector<3x16x16xf32>
    %c14 = arith.constant 14 : index
    %80 = memref.load %arg2[%c14] : memref<16xf32, #tpu.memory_space<smem>>
    %81 = vector.broadcast %80 : f32 to vector<3x16x16xf32>
    %82 = arith.mulf %79, %81 : vector<3x16x16xf32>
    %83 = arith.addf %78, %82 : vector<3x16x16xf32>
    %84 = vector.extract_strided_slice %68 {offsets = [0, 0, 3], sizes = [3, 16, 16], strides = [1, 1, 1]} : vector<3x16x19xf32> to vector<3x16x16xf32>
    %c15 = arith.constant 15 : index
    %85 = memref.load %arg2[%c15] : memref<16xf32, #tpu.memory_space<smem>>
    %86 = vector.broadcast %85 : f32 to vector<3x16x16xf32>
    %87 = arith.mulf %84, %86 : vector<3x16x16xf32>
    %88 = arith.addf %83, %87 : vector<3x16x16xf32>
    %89 = vector.shape_cast %88 : vector<3x16x16xf32> to vector<1x3x16x16xf32>
    %c0_16 = arith.constant 0 : index
    %c0_17 = arith.constant 0 : index
    %c0_18 = arith.constant 0 : index
    %90 = vector.load %arg4[%c0_16, %c0_17, %c0_18] : memref<3x16x16xf32, #tpu.memory_space<vmem>>, vector<3x16x16xf32>
    %91 = vector.shape_cast %90 : vector<3x16x16xf32> to vector<1x3x16x16xf32>
    %92 = arith.mulf %89, %91 : vector<1x3x16x16xf32>
    %93 = vector.shape_cast %92 : vector<1x3x16x16xf32> to vector<3x16x16xf32>
    %c0_19 = arith.constant 0 : index
    %c0_20 = arith.constant 0 : index
    %c2_21 = arith.constant 2 : index
    %c2_22 = arith.constant 2 : index
    %94 = vector.load %arg3[%c0_19, %c0_20, %c2_21, %c2_22] : memref<1x3x19x19xf32, #tpu.memory_space<vmem>>, vector<1x3x16x16xf32>
    %95 = vector.shape_cast %94 : vector<1x3x16x16xf32> to vector<3x16x16xf32>
    %cst_23 = arith.constant 0.000000e+00 : f32
    %96 = vector.broadcast %cst_23 : f32 to vector<3x16x16xf32>
    %97 = arith.cmpf one, %95, %96 : vector<3x16x16xf32>
    %98 = arith.select %97, %95, %93 : vector<3x16x16xi1>, vector<3x16x16xf32>
    %c0_24 = arith.constant 0 : index
    %c0_25 = arith.constant 0 : index
    %c0_26 = arith.constant 0 : index
    %99 = vector.load %arg5[%c0_24, %c0_25, %c0_26] : memref<3x16x16xf32, #tpu.memory_space<vmem>>, vector<3x16x16xf32>
    tpu.vector_store %arg5[%c0_24, %c0_25, %c0_26], %98 {strides = array<i32>} : memref<3x16x16xf32, #tpu.memory_space<vmem>>, vector<3x16x16xf32>,
    return
  }
  func.func @transform_0(%arg0: i32, %arg1: i32) -> i32 {
    %c0_i32 = arith.constant 0 : i32
    %c0_i32_0 = arith.constant 0 : i32
    return %c0_i32 : i32
  }
  func.func @transform_1(%arg0: i32, %arg1: i32) -> (i32, i32, i32, i32) {
    %c0_i32 = arith.constant 0 : i32
    %c0_i32_0 = arith.constant 0 : i32
    %c0_i32_1 = arith.constant 0 : i32
    return %arg1, %arg0, %c0_i32, %c0_i32_0 : i32, i32, i32, i32
  }
  func.func @transform_2(%arg0: i32, %arg1: i32) -> (i32, i32, i32) {
    %c0_i32 = arith.constant 0 : i32
    %c0_i32_0 = arith.constant 0 : i32
    %c0_i32_1 = arith.constant 0 : i32
    return %c0_i32, %arg1, %c0_i32_0 : i32, i32, i32
  }
  func.func @transform_3(%arg0: i32, %arg1: i32) -> (i32, i32, i32) {
    %c0_i32 = arith.constant 0 : i32
    %c0_i32_0 = arith.constant 0 : i32
    return %arg0, %arg1, %c0_i32 : i32, i32, i32
  }
}

</mosaic_0001>

<llo_original>
// kernel: new_crf_depth_forward.1
$region0: #{new_crf_depth_forward.1}
  #allocation0 [shape = 'u32[]', space=smem, size = 0x4, offset = 0x4, fixed_abs, tag = 'smem constant byte address 0x4 - core index']
  #allocation1 [shape = 'u32[144,128]{1,0:T(1,128)}', space=vmem, size = 0x12000, scoped, tag = 'internal scratch']
  %s0 = inlined_call_operand.vmem [shape: f32[16], index: 0, kind: input, shape index: {}]
  %s1 = inlined_call_operand.vmem [shape: f32[1,6,19,19], index: 1, kind: input, shape index: {}]
  %s2 = inlined_call_operand.vmem [shape: f32[3,16,16], index: 2, kind: input, shape index: {}]
  %s3 = inlined_call_operand.hbm [shape: f32[6,16,16], index: 3, kind: output, shape index: {}]
  %s4 = sld [smem:[#allocation0]]
  $region49: #{new_crf_depth_forward.1} parent=0
    _
  %s6 = ssub.s32 1, %s4
  %s7 = scalar_select 0, %s6, %s4
  $region1: #{new_crf_depth_forward.1} parent=0
    #allocation2 [shape = 'u8[512]{0}', space=smem, size = 0x200, scoped, tag = 'input window, operand 0, single buffered']
    #allocation3 [shape = 's32[2]{0}', space=sflag, size = 0x8, scoped, tag = 'scoped memory for new_crf_depth_forward.1']
    #allocation4 [shape = 's32[2]{0}', space=sflag, size = 0x8, scoped, tag = 'scoped memory for new_crf_depth_forward.1']
    #allocation5 [shape = 'u8[49152]{0}', space=vmem, size = 0xc000, scoped, tag = 'output window, operand 0']
    %8 = vsyncpa [#allocation4], 0
    %9 = vsyncpa [#allocation3], 0
    %s10 = scalar_lea.sflag [#allocation3], 1
    %11 = vsyncpa %s10, 0
    loop: start=0, step=1, limit=4
    $region2: #{new_crf_depth_forward.1} parent=1 // loop_pre_header
      _
    $region3: #{new_crf_depth_forward.1} parent=1 // loop_header
      %s13 = sphi 0, %s17
      %p14 = scmp.ge.s32.totalorder %s13, 4
      %s20 = sphi 0, %s32
      %s21 = sphi 0, %s28
      %s22 = sphi 0, %s20
      %s23 = sphi 0, %s21
      %s24 = sphi 0, %s22
      %s25 = sphi 0, %s23
      %s33 = sphi 0, %s33
      %s35 = sphi 0, %s33
      %s36 = sphi 0, %s35
      %s50 = sphi 0, %s36
      %s58 = sphi 0, %s60
      %s61 = sphi 0, %s58
      %s62 = sphi 0, %s61
      %s78 = sphi 0, %s62
      %s84 = sphi 0, %s86
      %s87 = sphi 0, %s84
      %s88 = sphi 0, %s87
      %s104 = sphi 0, %s88
      %s112 = sphi 0, %s114
      %s115 = sphi 0, %s112
      %s116 = sphi 0, %s115
      %s132 = sphi 0, %s116
    $region4: #{new_crf_depth_forward.1} parent=1 // loop_header_branch
      %16 = sbr.rel (%p14) target = $region8
    $region5: #{new_crf_depth_forward.1} parent=1 // loop_body
      %s18 = ssub.s32 %s13, 1
      %s19 = ssub.s32 %s13, 2
      %s26 = sadd.s32 1, %s21
      %p27 = scmp.ge.s32.totalorder %s26, 1
      %s28 = scalar_select %p27, 0, %s26
      %s29 = sadd.s32 1, %s20
      %s30 = scalar_select %p27, %s29, %s20
      %p31 = scmp.ge.s32.totalorder %s30, 2
      %s32 = scalar_select %p31, 0, %s30
      %s34 = sadd.s32 %s33, 1
      %p37 = scmp.eq.s32.totalorder %s13, 1
      %p38 = scmp.ne.s32.totalorder %s33, %s35
      %p39 = scmp.eq.s32.totalorder %s13, 0
      %p40 = por %p38, %p39
      %p41 = scmp.ne.s32.totalorder %s33, %s35
      %p42 = scmp.eq.s32.totalorder %s18, 1
      %p43 = por %p41, %p42
      %p44 = scmp.ne.s32.totalorder %s35, %s36
      %p45 = scmp.eq.s32.totalorder %s18, 0
      %p46 = por %p44, %p45
      %p47 = scmp.ne.s32.totalorder %s35, %s36
      %p48 = scmp.eq.s32.totalorder %s19, 1
      %p49 = por %p47, %p48
      %p51 = scmp.ne.s32.totalorder %s36, %s50
      %p52 = scmp.eq.s32.totalorder %s19, 0
      %p53 = por %p51, %p52
      %s54 = ssub.s32 %s21, %s28
      %s55 = ssub.s32 %s20, %s32
      %s56 = sor.u32 %s54, %s55
      %p57 = scmp.eq.s32.totalorder %s56, 0
      %s59 = sadd.s32 %s58, 1
      %s60 = scalar_select %p57, %s58, %s59
      %p63 = pneg %p57
      %p64 = scmp.eq.s32.totalorder %s13, 1
      %p65 = por %p63, %p64
      %p66 = scmp.ne.s32.totalorder %s58, %s61
      %p67 = scmp.eq.s32.totalorder %s13, 0
      %p68 = por %p66, %p67
      %p69 = scmp.ne.s32.totalorder %s58, %s61
      %p70 = scmp.eq.s32.totalorder %s18, 1
      %p71 = por %p69, %p70
      %p72 = scmp.ne.s32.totalorder %s61, %s62
      %p73 = scmp.eq.s32.totalorder %s18, 0
      %p74 = por %p72, %p73
      %p75 = scmp.ne.s32.totalorder %s61, %s62
      %p76 = scmp.eq.s32.totalorder %s19, 1
      %p77 = por %p75, %p76
      %p79 = scmp.ne.s32.totalorder %s62, %s78
      %p80 = scmp.eq.s32.totalorder %s19, 0
      %p81 = por %p79, %p80
      %s82 = ssub.s32 %s21, %s28
      %p83 = scmp.eq.s32.totalorder %s82, 0
      %s85 = sadd.s32 %s84, 1
      %s86 = scalar_select %p83, %s84, %s85
      %p89 = pneg %p83
      %p90 = scmp.eq.s32.totalorder %s13, 1
      %p91 = por %p89, %p90
      %p92 = scmp.ne.s32.totalorder %s84, %s87
      %p93 = scmp.eq.s32.totalorder %s13, 0
      %p94 = por %p92, %p93
      %p95 = scmp.ne.s32.totalorder %s84, %s87
      %p96 = scmp.eq.s32.totalorder %s18, 1
      %p97 = por %p95, %p96
      %p98 = scmp.ne.s32.totalorder %s87, %s88
      %p99 = scmp.eq.s32.totalorder %s18, 0
      %p100 = por %p98, %p99
      %p101 = scmp.ne.s32.totalorder %s87, %s88
      %p102 = scmp.eq.s32.totalorder %s19, 1
      %p103 = por %p101, %p102
      %p105 = scmp.ne.s32.totalorder %s88, %s104
      %p106 = scmp.eq.s32.totalorder %s19, 0
      %p107 = por %p105, %p106
      %s108 = ssub.s32 %s20, %s32
      %s109 = ssub.s32 %s21, %s28
      %s110 = sor.u32 %s108, %s109
      %p111 = scmp.eq.s32.totalorder %s110, 0
      %s113 = sadd.s32 %s112, 1
      %s114 = scalar_select %p111, %s112, %s113
      %p117 = pneg %p111
      %p118 = scmp.eq.s32.totalorder %s13, 1
      %p119 = por %p117, %p118
      %p120 = scmp.ne.s32.totalorder %s112, %s115
      %p121 = scmp.eq.s32.totalorder %s13, 0
      %p122 = por %p120, %p121
      %p123 = scmp.ne.s32.totalorder %s112, %s115
      %p124 = scmp.eq.s32.totalorder %s18, 1
      %p125 = por %p123, %p124
      %p126 = scmp.ne.s32.totalorder %s115, %s116
      %p127 = scmp.eq.s32.totalorder %s18, 0
      %p128 = por %p126, %p127
      %p129 = scmp.ne.s32.totalorder %s115, %s116
      %p130 = scmp.eq.s32.totalorder %s19, 1
      %p131 = por %p129, %p130
      %p133 = scmp.ne.s32.totalorder %s116, %s132
      %p134 = scmp.eq.s32.totalorder %s19, 0
      %p135 = por %p133, %p134
      %p136 = scmp.le.s32.totalorder 1, %s13
      %p137 = scmp.lt.s32.totalorder %s13, 3
      %p138 = pnand %p136, %p137
      %p139 = pneg %p138
      // Predicated region
      $region9: #{new_crf_depth_forward.1} parent=5 // pred_check
        _
      $region10: #{new_crf_depth_forward.1} parent=5 // pred_check_branch
        %141 = sbr.rel (%p138) target = $region12
      $region11: #{new_crf_depth_forward.1} parent=5 // pred_region
        %s142 = ssub.s32 %s13, 1
        // Predicated region
        $region13: #{new_crf_depth_forward.1} parent=11 // pred_check
          %p143 = pneg %p46
        $region14: #{new_crf_depth_forward.1} parent=11 // pred_check_branch
          %145 = sbr.rel (%p143) target = $region16
        $region15: #{new_crf_depth_forward.1} parent=11 // pred_region
          %s147 = ssub.s32 16, 16
          %148 = vsyncadd [#allocation4], %s147
          %s150 = sshll.u32 %s0, 4
          %s151 = int_to_ptr.vmem [resolvable:$true] %s150
          %153 = dma.vmem_to_smem %s151, 16, [#allocation2], [#allocation4]
        $region16: #{new_crf_depth_forward.1} parent=11 // pred_fallthru
          _
        // Predicated region
        $region17: #{new_crf_depth_forward.1} parent=11 // pred_check
          %p154 = pneg %p100
        $region18: #{new_crf_depth_forward.1} parent=11 // pred_check_branch
          %156 = sbr.rel (%p154) target = $region20
        $region19: #{new_crf_depth_forward.1} parent=11 // pred_region
          %s157 = smul.u32 2, %s23
          %p158 = scmp.lt.s32.totalorder %s157, 1
          %s159 = scalar_select %p158, %s157, 1
          %s160 = smul.addr %s159, 8
          %s161 = scalar_lea.vmem %s2, %s160
          %s162 = smul.u32 2, %s23
        $region20: #{new_crf_depth_forward.1} parent=11 // pred_fallthru
          _
      $region12: #{new_crf_depth_forward.1} parent=5 // pred_fallthru
        _
      %p163 = scmp.lt.s32.totalorder %s13, 2
      // Predicated region
      $region21: #{new_crf_depth_forward.1} parent=5 // pred_check
        %p164 = pneg %p163
      $region22: #{new_crf_depth_forward.1} parent=5 // pred_check_branch
        %166 = sbr.rel (%p164) target = $region24
      $region23: #{new_crf_depth_forward.1} parent=5 // pred_region
        // Predicated region
        $region25: #{new_crf_depth_forward.1} parent=23 // pred_check
          %p167 = pneg %p68
        $region26: #{new_crf_depth_forward.1} parent=23 // pred_check_branch
          %169 = sbr.rel (%p167) target = $region28
        $region27: #{new_crf_depth_forward.1} parent=23 // pred_region
          %s170 = smul.u32 3, %s20
          %p171 = scmp.lt.s32.totalorder %s21, 0
          %s172 = scalar_select %p171, %s21, 0
          %p173 = scmp.lt.s32.totalorder %s170, 5
          %s174 = scalar_select %p173, %s170, 5
          %s175 = smul.addr %s174, 3
          %s176 = smul.addr %s172, 18
          %s177 = sadd.s32 %s175, %s176
          %s178 = smul.addr %s177, 8
          %s179 = scalar_lea.vmem %s1, %s178
          %s180 = smul.u32 3, %s20
        $region28: #{new_crf_depth_forward.1} parent=23 // pred_fallthru
          _
      $region24: #{new_crf_depth_forward.1} parent=5 // pred_fallthru
        _
      %p181 = scmp.le.s32.totalorder 1, %s13
      %p182 = scmp.lt.s32.totalorder %s13, 3
      %p183 = pnand %p181, %p182
      %p184 = pneg %p183
      // Predicated region
      $region29: #{new_crf_depth_forward.1} parent=5 // pred_check
        _
      $region30: #{new_crf_depth_forward.1} parent=5 // pred_check_branch
        %186 = sbr.rel (%p183) target = $region32
      $region31: #{new_crf_depth_forward.1} parent=5 // pred_region
        %s187 = ssub.s32 %s13, 1
        // Predicated region
        $region33: #{new_crf_depth_forward.1} parent=31 // pred_check
          %p188 = pneg %p46
        $region34: #{new_crf_depth_forward.1} parent=31 // pred_check_branch
          %190 = sbr.rel (%p188) target = $region36
        $region35: #{new_crf_depth_forward.1} parent=31 // pred_region
          %191 = dma.done [#allocation4], 16
        $region36: #{new_crf_depth_forward.1} parent=31 // pred_fallthru
          _
        %192 = sfence
        %p193 = pneg %p46
        %p194 = pneg %p43
        %s195 = smul.u32 3, %s22
        %p196 = scmp.lt.s32.totalorder %s23, 0
        %s197 = scalar_select %p196, %s23, 0
        %p198 = scmp.lt.s32.totalorder %s195, 5
        %s199 = scalar_select %p198, %s195, 5
        %s200 = smul.addr %s199, 3
        %s201 = smul.addr %s197, 18
        %s202 = sadd.s32 %s200, %s201
        %s203 = smul.addr %s202, 8
        %s204 = scalar_lea.vmem %s1, %s203
        %p205 = pneg %p74
        %p206 = pneg %p71
        %s207 = smul.u32 2, %s23
        %p208 = scmp.lt.s32.totalorder %s207, 1
        %s209 = scalar_select %p208, %s207, 1
        %s210 = smul.addr %s209, 8
        %s211 = scalar_lea.vmem %s2, %s210
        %p212 = pneg %p100
        %p213 = pneg %p97
        %p214 = pneg %p128
        %p215 = pneg %p125
        %s216 = sand.u32 %s115, 1
        %s217 = scalar_lea.sflag [#allocation3], %s216
        %s218 = sand.u32 %s115, 1
        %s219 = smul.addr %s218, 48
        %s220 = scalar_lea.vmem [#allocation5], %s219
        %s221 = smul.u32 3, %s22
        %p222 = scmp.lt.s32.totalorder %s23, 0
        %s223 = scalar_select %p222, %s23, 0
        %p224 = scmp.lt.s32.totalorder %s221, 5
        %s225 = scalar_select %p224, %s221, 5
        %s226 = smul.addr %s225, 3
        %s227 = smul.addr %s223, 18
        %s228 = sadd.s32 %s226, %s227
        %s229 = smul.addr %s228, 8
        %s230 = scalar_lea.vmem %s1, %s229
        %s231 = smul.u32 3, %s22
        %s232 = smul.u32 2, %s23
        %p233 = scmp.lt.s32.totalorder %s232, 1
        %s234 = scalar_select %p233, %s232, 1
        %s235 = smul.addr %s234, 8
        %s236 = scalar_lea.vmem %s2, %s235
        %s237 = smul.u32 2, %s23
        %s238 = smul.u32 3, %s22
        %s239 = smul.u32 2, %s23
        %v240 = vld [vmem:[%s230] sm:$0xff]
        %v241 = vld [vmem:[%s230 + $0x8] sm:$0xff]
        %v242 = vld [vmem:[%s230 + $0x18] sm:$0xff]
        %v243 = vld [vmem:[%s230 + $0x20] sm:$0xff]
        %v244 = vld [vmem:[%s230 + $0x30] sm:$0xff]
        %v245 = vld [vmem:[%s230 + $0x38] sm:$0xff]
        %s246 = sld [smem:[#allocation2]]
        %v247 = vstv %s246
        %v248 = vmul.f32 %v240, %v247
        %v249 = vmul.f32 %v241, %v247
        %v250 = vmul.f32 %v242, %v247
        %v251 = vmul.f32 %v243, %v247
        %v252 = vmul.f32 %v244, %v247
        %v253 = vmul.f32 %v245, %v247
        %v254 = vadd.f32 %v248, 0.0
        %v255 = vadd.f32 %v249, 0.0
        %v256 = vadd.f32 %v250, 0.0
        %v257 = vadd.f32 %v251, 0.0
        %v258 = vadd.f32 %v252, 0.0
        %v259 = vadd.f32 %v253, 0.0
        %s260 = sld [smem:[#allocation2 + $0x1]]
        %v261 = vstv %s260
        %v262 = vmul.f32 %v240, %v261
        %v263 = vmul.f32 %v241, %v261
        %v264 = vmul.f32 %v242, %v261
        %v265 = vmul.f32 %v243, %v261
        %v266 = vmul.f32 %v244, %v261
        %v267 = vmul.f32 %v245, %v261
        %274 = vrot.lane.b32.xlu0 %v262, 127
        %v275 = vpop.permute.xlu0 %274
        %276 = vrot.lane.b32.xlu0 %v263, 127
        %v277 = vpop.permute.xlu0 %276
        %278 = vrot.lane.b32.xlu0 %v264, 127
        %v279 = vpop.permute.xlu0 %278
        %280 = vrot.lane.b32.xlu0 %v265, 127
        %v281 = vpop.permute.xlu0 %280
        %282 = vrot.lane.b32.xlu0 %v266, 127
        %v283 = vpop.permute.xlu0 %282
        %284 = vrot.lane.b32.xlu0 %v267, 127
        %v285 = vpop.permute.xlu0 %284
        %v292 = vadd.f32 %v254, %v275
        %v293 = vadd.f32 %v255, %v277
        %v294 = vadd.f32 %v256, %v279
        %v295 = vadd.f32 %v257, %v281
        %v296 = vadd.f32 %v258, %v283
        %v297 = vadd.f32 %v259, %v285
        %s298 = sld [smem:[#allocation2 + $0x2]]
        %v299 = vstv %s298
        %v300 = vmul.f32 %v240, %v299
        %v301 = vmul.f32 %v241, %v299
        %v302 = vmul.f32 %v242, %v299
        %v303 = vmul.f32 %v243, %v299
        %v304 = vmul.f32 %v244, %v299
        %v305 = vmul.f32 %v245, %v299
        %312 = vrot.lane.b32.xlu0 %v300, 126
        %v313 = vpop.permute.xlu0 %312
        %314 = vrot.lane.b32.xlu0 %v301, 126
        %v315 = vpop.permute.xlu0 %314
        %316 = vrot.lane.b32.xlu0 %v302, 126
        %v317 = vpop.permute.xlu0 %316
        %318 = vrot.lane.b32.xlu0 %v303, 126
        %v319 = vpop.permute.xlu0 %318
        %320 = vrot.lane.b32.xlu0 %v304, 126
        %v321 = vpop.permute.xlu0 %320
        %322 = vrot.lane.b32.xlu0 %v305, 126
        %v323 = vpop.permute.xlu0 %322
        %v330 = vadd.f32 %v292, %v313
        %v331 = vadd.f32 %v293, %v315
        %v332 = vadd.f32 %v294, %v317
        %v333 = vadd.f32 %v295, %v319
        %v334 = vadd.f32 %v296, %v321
        %v335 = vadd.f32 %v297, %v323
        %s336 = sld [smem:[#allocation2 + $0x3]]
        %v337 = vstv %s336
        %v338 = vmul.f32 %v240, %v337
        %v339 = vmul.f32 %v241, %v337
        %v340 = vmul.f32 %v242, %v337
        %v341 = vmul.f32 %v243, %v337
        %v342 = vmul.f32 %v244, %v337
        %v343 = vmul.f32 %v245, %v337
        %350 = vrot.lane.b32.xlu0 %v338, 125
        %v351 = vpop.permute.xlu0 %350
        %352 = vrot.lane.b32.xlu0 %v339, 125
        %v353 = vpop.permute.xlu0 %352
        %354 = vrot.lane.b32.xlu0 %v340, 125
        %v355 = vpop.permute.xlu0 %354
        %356 = vrot.lane.b32.xlu0 %v341, 125
        %v357 = vpop.permute.xlu0 %356
        %358 = vrot.lane.b32.xlu0 %v342, 125
        %v359 = vpop.permute.xlu0 %358
        %360 = vrot.lane.b32.xlu0 %v343, 125
        %v361 = vpop.permute.xlu0 %360
        %v368 = vadd.f32 %v330, %v351
        %v369 = vadd.f32 %v331, %v353
        %v370 = vadd.f32 %v332, %v355
        %v371 = vadd.f32 %v333, %v357
        %v372 = vadd.f32 %v334, %v359
        %v373 = vadd.f32 %v335, %v361
        %v374 = vld [vmem:[%s230 + $0x1] sm:$0xff]
        %v375 = vld [vmem:[%s230 + $0x9] sm:$0xff]
        %v376 = vld [vmem:[%s230 + $0x19] sm:$0xff]
        %v377 = vld [vmem:[%s230 + $0x21] sm:$0xff]
        %v378 = vld [vmem:[%s230 + $0x31] sm:$0xff]
        %v379 = vld [vmem:[%s230 + $0x39] sm:$0xff]
        %s380 = sld [smem:[#allocation2 + $0x4]]
        %v381 = vstv %s380
        %v382 = vmul.f32 %v374, %v381
        %v383 = vmul.f32 %v375, %v381
        %v384 = vmul.f32 %v376, %v381
        %v385 = vmul.f32 %v377, %v381
        %v386 = vmul.f32 %v378, %v381
        %v387 = vmul.f32 %v379, %v381
        %v388 = vadd.f32 %v368, %v382
        %v389 = vadd.f32 %v369, %v383
        %v390 = vadd.f32 %v370, %v384
        %v391 = vadd.f32 %v371, %v385
        %v392 = vadd.f32 %v372, %v386
        %v393 = vadd.f32 %v373, %v387
        %s394 = sld [smem:[#allocation2 + $0x5]]
        %v395 = vstv %s394
        %v396 = vmul.f32 %v374, %v395
        %v397 = vmul.f32 %v375, %v395
        %v398 = vmul.f32 %v376, %v395
        %v399 = vmul.f32 %v377, %v395
        %v400 = vmul.f32 %v378, %v395
        %v401 = vmul.f32 %v379, %v395
        %408 = vrot.lane.b32.xlu0 %v396, 127
        %v409 = vpop.permute.xlu0 %408
        %410 = vrot.lane.b32.xlu0 %v397, 127
        %v411 = vpop.permute.xlu0 %410
        %412 = vrot.lane.b32.xlu0 %v398, 127
        %v413 = vpop.permute.xlu0 %412
        %414 = vrot.lane.b32.xlu0 %v399, 127
        %v415 = vpop.permute.xlu0 %414
        %416 = vrot.lane.b32.xlu0 %v400, 127
        %v417 = vpop.permute.xlu0 %416
        %418 = vrot.lane.b32.xlu0 %v401, 127
        %v419 = vpop.permute.xlu0 %418
        %v426 = vadd.f32 %v388, %v409
        %v427 = vadd.f32 %v389, %v411
        %v428 = vadd.f32 %v390, %v413
        %v429 = vadd.f32 %v391, %v415
        %v430 = vadd.f32 %v392, %v417
        %v431 = vadd.f32 %v393, %v419
        %s432 = sld [smem:[#allocation2 + $0x6]]
        %v433 = vstv %s432
        %v434 = vmul.f32 %v374, %v433
        %v435 = vmul.f32 %v375, %v433
        %v436 = vmul.f32 %v376, %v433
        %v437 = vmul.f32 %v377, %v433
        %v438 = vmul.f32 %v378, %v433
        %v439 = vmul.f32 %v379, %v433
        %446 = vrot.lane.b32.xlu0 %v434, 126
        %v447 = vpop.permute.xlu0 %446
        %448 = vrot.lane.b32.xlu0 %v435, 126
        %v449 = vpop.permute.xlu0 %448
        %450 = vrot.lane.b32.xlu0 %v436, 126
        %v451 = vpop.permute.xlu0 %450
        %452 = vrot.lane.b32.xlu0 %v437, 126
        %v453 = vpop.permute.xlu0 %452
        %454 = vrot.lane.b32.xlu0 %v438, 126
        %v455 = vpop.permute.xlu0 %454
        %456 = vrot.lane.b32.xlu0 %v439, 126
        %v457 = vpop.permute.xlu0 %456
        %v464 = vadd.f32 %v426, %v447
        %v465 = vadd.f32 %v427, %v449
        %v466 = vadd.f32 %v428, %v451
        %v467 = vadd.f32 %v429, %v453
        %v468 = vadd.f32 %v430, %v455
        %v469 = vadd.f32 %v431, %v457
        %s470 = sld [smem:[#allocation2 + $0x7]]
        %v471 = vstv %s470
        %v472 = vmul.f32 %v374, %v471
        %v473 = vmul.f32 %v375, %v471
        %v474 = vmul.f32 %v376, %v471
        %v475 = vmul.f32 %v377, %v471
        %v476 = vmul.f32 %v378, %v471
        %v477 = vmul.f32 %v379, %v471
        %484 = vrot.lane.b32.xlu0 %v472, 125
        %v485 = vpop.permute.xlu0 %484
        %486 = vrot.lane.b32.xlu0 %v473, 125
        %v487 = vpop.permute.xlu0 %486
        %488 = vrot.lane.b32.xlu0 %v474, 125
        %v489 = vpop.permute.xlu0 %488
        %490 = vrot.lane.b32.xlu0 %v475, 125
        %v491 = vpop.permute.xlu0 %490
        %492 = vrot.lane.b32.xlu0 %v476, 125
        %v493 = vpop.permute.xlu0 %492
        %494 = vrot.lane.b32.xlu0 %v477, 125
        %v495 = vpop.permute.xlu0 %494
        %v502 = vadd.f32 %v464, %v485
        %v503 = vadd.f32 %v465, %v487
        %v504 = vadd.f32 %v466, %v489
        %v505 = vadd.f32 %v467, %v491
        %v506 = vadd.f32 %v468, %v493
        %v507 = vadd.f32 %v469, %v495
        %v508 = vld [vmem:[%s230 + $0x2] sm:$0xff]
        %v509 = vld [vmem:[%s230 + $0xa] sm:$0xff]
        %v510 = vld [vmem:[%s230 + $0x1a] sm:$0xff]
        %v511 = vld [vmem:[%s230 + $0x22] sm:$0xff]
        %v512 = vld [vmem:[%s230 + $0x32] sm:$0xff]
        %v513 = vld [vmem:[%s230 + $0x3a] sm:$0xff]
        %s514 = sld [smem:[#allocation2 + $0x8]]
        %v515 = vstv %s514
        %v516 = vmul.f32 %v508, %v515
        %v517 = vmul.f32 %v509, %v515
        %v518 = vmul.f32 %v510, %v515
        %v519 = vmul.f32 %v511, %v515
        %v520 = vmul.f32 %v512, %v515
        %v521 = vmul.f32 %v513, %v515
        %v522 = vadd.f32 %v502, %v516
        %v523 = vadd.f32 %v503, %v517
        %v524 = vadd.f32 %v504, %v518
        %v525 = vadd.f32 %v505, %v519
        %v526 = vadd.f32 %v506, %v520
        %v527 = vadd.f32 %v507, %v521
        %s528 = sld [smem:[#allocation2 + $0x9]]
        %v529 = vstv %s528
        %v530 = vmul.f32 %v508, %v529
        %v531 = vmul.f32 %v509, %v529
        %v532 = vmul.f32 %v510, %v529
        %v533 = vmul.f32 %v511, %v529
        %v534 = vmul.f32 %v512, %v529
        %v535 = vmul.f32 %v513, %v529
        %542 = vrot.lane.b32.xlu0 %v530, 127
        %v543 = vpop.permute.xlu0 %542
        %544 = vrot.lane.b32.xlu0 %v531, 127
        %v545 = vpop.permute.xlu0 %544
        %546 = vrot.lane.b32.xlu0 %v532, 127
        %v547 = vpop.permute.xlu0 %546
        %548 = vrot.lane.b32.xlu0 %v533, 127
        %v549 = vpop.permute.xlu0 %548
        %550 = vrot.lane.b32.xlu0 %v534, 127
        %v551 = vpop.permute.xlu0 %550
        %552 = vrot.lane.b32.xlu0 %v535, 127
        %v553 = vpop.permute.xlu0 %552
        %v560 = vadd.f32 %v522, %v543
        %v561 = vadd.f32 %v523, %v545
        %v562 = vadd.f32 %v524, %v547
        %v563 = vadd.f32 %v525, %v549
        %v564 = vadd.f32 %v526, %v551
        %v565 = vadd.f32 %v527, %v553
        %s566 = sld [smem:[#allocation2 + $0xa]]
        %v567 = vstv %s566
        %v568 = vmul.f32 %v508, %v567
        %v569 = vmul.f32 %v509, %v567
        %v570 = vmul.f32 %v510, %v567
        %v571 = vmul.f32 %v511, %v567
        %v572 = vmul.f32 %v512, %v567
        %v573 = vmul.f32 %v513, %v567
        %580 = vrot.lane.b32.xlu0 %v568, 126
        %v581 = vpop.permute.xlu0 %580
        %582 = vrot.lane.b32.xlu0 %v569, 126
        %v583 = vpop.permute.xlu0 %582
        %584 = vrot.lane.b32.xlu0 %v570, 126
        %v585 = vpop.permute.xlu0 %584
        %586 = vrot.lane.b32.xlu0 %v571, 126
        %v587 = vpop.permute.xlu0 %586
        %588 = vrot.lane.b32.xlu0 %v572, 126
        %v589 = vpop.permute.xlu0 %588
        %590 = vrot.lane.b32.xlu0 %v573, 126
        %v591 = vpop.permute.xlu0 %590
        %v598 = vadd.f32 %v560, %v581
        %v599 = vadd.f32 %v561, %v583
        %v600 = vadd.f32 %v562, %v585
        %v601 = vadd.f32 %v563, %v587
        %v602 = vadd.f32 %v564, %v589
        %v603 = vadd.f32 %v565, %v591
        %s604 = sld [smem:[#allocation2 + $0xb]]
        %v605 = vstv %s604
        %v606 = vmul.f32 %v508, %v605
        %v607 = vmul.f32 %v509, %v605
        %v608 = vmul.f32 %v510, %v605
        %v609 = vmul.f32 %v511, %v605
        %v610 = vmul.f32 %v512, %v605
        %v611 = vmul.f32 %v513, %v605
        %618 = vrot.lane.b32.xlu0 %v606, 125
        %v619 = vpop.permute.xlu0 %618
        %620 = vrot.lane.b32.xlu0 %v607, 125
        %v621 = vpop.permute.xlu0 %620
        %622 = vrot.lane.b32.xlu0 %v608, 125
        %v623 = vpop.permute.xlu0 %622
        %624 = vrot.lane.b32.xlu0 %v609, 125
        %v625 = vpop.permute.xlu0 %624
        %626 = vrot.lane.b32.xlu0 %v610, 125
        %v627 = vpop.permute.xlu0 %626
        %628 = vrot.lane.b32.xlu0 %v611, 125
        %v629 = vpop.permute.xlu0 %628
        %v636 = vadd.f32 %v598, %v619
        %v637 = vadd.f32 %v599, %v621
        %v638 = vadd.f32 %v600, %v623
        %v639 = vadd.f32 %v601, %v625
        %v640 = vadd.f32 %v602, %v627
        %v641 = vadd.f32 %v603, %v629
        %v642 = vld [vmem:[%s230 + $0x3] sm:$0xff]
        %v643 = vld [vmem:[%s230 + $0xb] sm:$0xff]
        %v644 = vld [vmem:[%s230 + $0x1b] sm:$0xff]
        %v645 = vld [vmem:[%s230 + $0x23] sm:$0xff]
        %v646 = vld [vmem:[%s230 + $0x33] sm:$0xff]
        %v647 = vld [vmem:[%s230 + $0x3b] sm:$0xff]
        %s648 = sld [smem:[#allocation2 + $0xc]]
        %v649 = vstv %s648
        %v650 = vmul.f32 %v642, %v649
        %v651 = vmul.f32 %v643, %v649
        %v652 = vmul.f32 %v644, %v649
        %v653 = vmul.f32 %v645, %v649
        %v654 = vmul.f32 %v646, %v649
        %v655 = vmul.f32 %v647, %v649
        %v656 = vadd.f32 %v636, %v650
        %v657 = vadd.f32 %v637, %v651
        %v658 = vadd.f32 %v638, %v652
        %v659 = vadd.f32 %v639, %v653
        %v660 = vadd.f32 %v640, %v654
        %v661 = vadd.f32 %v641, %v655
        %s662 = sld [smem:[#allocation2 + $0xd]]
        %v663 = vstv %s662
        %v664 = vmul.f32 %v642, %v663
        %v665 = vmul.f32 %v643, %v663
        %v666 = vmul.f32 %v644, %v663
        %v667 = vmul.f32 %v645, %v663
        %v668 = vmul.f32 %v646, %v663
        %v669 = vmul.f32 %v647, %v663
        %676 = vrot.lane.b32.xlu0 %v664, 127
        %v677 = vpop.permute.xlu0 %676
        %678 = vrot.lane.b32.xlu0 %v665, 127
        %v679 = vpop.permute.xlu0 %678
        %680 = vrot.lane.b32.xlu0 %v666, 127
        %v681 = vpop.permute.xlu0 %680
        %682 = vrot.lane.b32.xlu0 %v667, 127
        %v683 = vpop.permute.xlu0 %682
        %684 = vrot.lane.b32.xlu0 %v668, 127
        %v685 = vpop.permute.xlu0 %684
        %686 = vrot.lane.b32.xlu0 %v669, 127
        %v687 = vpop.permute.xlu0 %686
        %v694 = vadd.f32 %v656, %v677
        %v695 = vadd.f32 %v657, %v679
        %v696 = vadd.f32 %v658, %v681
        %v697 = vadd.f32 %v659, %v683
        %v698 = vadd.f32 %v660, %v685
        %v699 = vadd.f32 %v661, %v687
        %s700 = sld [smem:[#allocation2 + $0xe]]
        %v701 = vstv %s700
        %v702 = vmul.f32 %v642, %v701
        %v703 = vmul.f32 %v643, %v701
        %v704 = vmul.f32 %v644, %v701
        %v705 = vmul.f32 %v645, %v701
        %v706 = vmul.f32 %v646, %v701
        %v707 = vmul.f32 %v647, %v701
        %714 = vrot.lane.b32.xlu0 %v702, 126
        %v715 = vpop.permute.xlu0 %714
        %716 = vrot.lane.b32.xlu0 %v703, 126
        %v717 = vpop.permute.xlu0 %716
        %718 = vrot.lane.b32.xlu0 %v704, 126
        %v719 = vpop.permute.xlu0 %718
        %720 = vrot.lane.b32.xlu0 %v705, 126
        %v721 = vpop.permute.xlu0 %720
        %722 = vrot.lane.b32.xlu0 %v706, 126
        %v723 = vpop.permute.xlu0 %722
        %724 = vrot.lane.b32.xlu0 %v707, 126
        %v725 = vpop.permute.xlu0 %724
        %v732 = vadd.f32 %v694, %v715
        %v733 = vadd.f32 %v695, %v717
        %v734 = vadd.f32 %v696, %v719
        %v735 = vadd.f32 %v697, %v721
        %v736 = vadd.f32 %v698, %v723
        %v737 = vadd.f32 %v699, %v725
        %s738 = sld [smem:[#allocation2 + $0xf]]
        %v739 = vstv %s738
        %v740 = vmul.f32 %v642, %v739
        %v741 = vmul.f32 %v643, %v739
        %v742 = vmul.f32 %v644, %v739
        %v743 = vmul.f32 %v645, %v739
        %v744 = vmul.f32 %v646, %v739
        %v745 = vmul.f32 %v647, %v739
        %752 = vrot.lane.b32.xlu0 %v740, 125
        %v753 = vpop.permute.xlu0 %752
        %754 = vrot.lane.b32.xlu0 %v741, 125
        %v755 = vpop.permute.xlu0 %754
        %756 = vrot.lane.b32.xlu0 %v742, 125
        %v757 = vpop.permute.xlu0 %756
        %758 = vrot.lane.b32.xlu0 %v743, 125
        %v759 = vpop.permute.xlu0 %758
        %760 = vrot.lane.b32.xlu0 %v744, 125
        %v761 = vpop.permute.xlu0 %760
        %762 = vrot.lane.b32.xlu0 %v745, 125
        %v763 = vpop.permute.xlu0 %762
        %v770 = vadd.f32 %v732, %v753
        %v771 = vadd.f32 %v733, %v755
        %v772 = vadd.f32 %v734, %v757
        %v773 = vadd.f32 %v735, %v759
        %v774 = vadd.f32 %v736, %v761
        %v775 = vadd.f32 %v737, %v763
        %v776 = vld [vmem:[%s236] sm:$0xff]
        %v777 = vld [vmem:[%s236 + $0x8] sm:$0xff]
        %v778 = vld [vmem:[%s236 + $0x10] sm:$0xff]
        %v779 = vld [vmem:[%s236 + $0x18] sm:$0xff]
        %v780 = vld [vmem:[%s236 + $0x20] sm:$0xff]
        %v781 = vld [vmem:[%s236 + $0x28] sm:$0xff]
        %v782 = vmul.f32 %v770, %v776
        %v783 = vmul.f32 %v771, %v777
        %v784 = vmul.f32 %v772, %v778
        %v785 = vmul.f32 %v773, %v779
        %v786 = vmul.f32 %v774, %v780
        %v787 = vmul.f32 %v775, %v781
        %vm788 = vcmp.ne.f32.partialorder %v508, 0.0
        %vm789 = vcmp.ne.f32.partialorder %v509, 0.0
        %vm790 = vcmp.ne.f32.partialorder %v510, 0.0
        %vm791 = vcmp.ne.f32.partialorder %v511, 0.0
        %vm792 = vcmp.ne.f32.partialorder %v512, 0.0
        %vm793 = vcmp.ne.f32.partialorder %v513, 0.0
        %800 = vrot.lane.b32.xlu0 %v782, 2
        %v801 = vpop.permute.xlu0 %800
        %802 = vrot.lane.b32.xlu0 %v783, 2
        %v803 = vpop.permute.xlu0 %802
        %804 = vrot.lane.b32.xlu0 %v784, 2
        %v805 = vpop.permute.xlu0 %804
        %806 = vrot.lane.b32.xlu0 %v785, 2
        %v807 = vpop.permute.xlu0 %806
        %808 = vrot.lane.b32.xlu0 %v786, 2
        %v809 = vpop.permute.xlu0 %808
        %810 = vrot.lane.b32.xlu0 %v787, 2
        %v811 = vpop.permute.xlu0 %810
        %v818 = vsel %vm788, %v508, %v801
        %v819 = vsel %vm789, %v509, %v803
        %v820 = vsel %vm790, %v510, %v805
        %v821 = vsel %vm791, %v511, %v807
        %v822 = vsel %vm792, %v512, %v809
        %v823 = vsel %vm793, %v513, %v811
        %830 = vrot.lane.b32.xlu0 %v818, 126
        %v831 = vpop.permute.xlu0 %830
        %832 = vrot.lane.b32.xlu0 %v819, 126
        %v833 = vpop.permute.xlu0 %832
        %834 = vrot.lane.b32.xlu0 %v820, 126
        %v835 = vpop.permute.xlu0 %834
        %836 = vrot.lane.b32.xlu0 %v821, 126
        %v837 = vpop.permute.xlu0 %836
        %838 = vrot.lane.b32.xlu0 %v822, 126
        %v839 = vpop.permute.xlu0 %838
        %840 = vrot.lane.b32.xlu0 %v823, 126
        %v841 = vpop.permute.xlu0 %840
        %vm848 = vcmask 130048
        %849 = vst.msk [vmem:[%s220] sm:$0xff] %vm848, %v831
        %850 = vst.msk [vmem:[%s220 + $0x8] sm:$0xff] %vm848, %v833
        %851 = vst.msk [vmem:[%s220 + $0x10] sm:$0xff] %vm848, %v835
        %852 = vst.msk [vmem:[%s220 + $0x18] sm:$0xff] %vm848, %v837
        %853 = vst.msk [vmem:[%s220 + $0x20] sm:$0xff] %vm848, %v839
        %854 = vst.msk [vmem:[%s220 + $0x28] sm:$0xff] %vm848, %v841
        %s855 = sand.u32 %s115, 1
        %s856 = scalar_lea.sflag [#allocation3], %s855
        %s857 = sand.u32 %s115, 1
        %s858 = smul.addr %s857, 48
        %s859 = scalar_lea.vmem [#allocation5], %s858
        // Predicated region
        $region37: #{new_crf_depth_forward.1} parent=31 // pred_check
          %p860 = pneg %p125
        $region38: #{new_crf_depth_forward.1} parent=31 // pred_check_branch
          %862 = sbr.rel (%p860) target = $region40
        $region39: #{new_crf_depth_forward.1} parent=31 // pred_region
          %s863 = smul.u32 3, %s22
          %s864 = smul.u32 2, %s23
          %s866 = ssub.s32 768, 768
          %867 = vsyncadd %s856, %s866
          %s868 = smul.addr %s863, 2
          %s869 = sadd.s32 %s864, %s868
          %s870 = smul.addr %s869, 128
          %s871 = scalar_lea.hbm %s3, %s870
          %s872 = sshll.u32 %s859, 4
          %s873 = int_to_ptr.vmem [resolvable:$true] %s872
          %878 = dma.vmem_to_hbm [thread:$0]  %s873, 768, %s871, %s856, 128, 128, 8
        $region40: #{new_crf_depth_forward.1} parent=31 // pred_fallthru
          _
      $region32: #{new_crf_depth_forward.1} parent=5 // pred_fallthru
        _
      %p879 = scmp.le.s32.totalorder 2, %s13
      // Predicated region
      $region41: #{new_crf_depth_forward.1} parent=5 // pred_check
        %p880 = pneg %p879
      $region42: #{new_crf_depth_forward.1} parent=5 // pred_check_branch
        %882 = sbr.rel (%p880) target = $region44
      $region43: #{new_crf_depth_forward.1} parent=5 // pred_region
        %s883 = ssub.s32 %s13, 2
        // Predicated region
        $region45: #{new_crf_depth_forward.1} parent=43 // pred_check
          %p884 = pneg %p131
        $region46: #{new_crf_depth_forward.1} parent=43 // pred_check_branch
          %886 = sbr.rel (%p884) target = $region48
        $region47: #{new_crf_depth_forward.1} parent=43 // pred_region
          %s887 = sand.u32 %s116, 1
          %s888 = scalar_lea.sflag [#allocation3], %s887
          %s889 = sand.u32 %s116, 1
          %s890 = smul.addr %s889, 48
          %s891 = scalar_lea.vmem [#allocation5], %s890
          %892 = dma.done %s888, 768
        $region48: #{new_crf_depth_forward.1} parent=43 // pred_fallthru
          _
      $region44: #{new_crf_depth_forward.1} parent=5 // pred_fallthru
        _
    $region6: #{new_crf_depth_forward.1} parent=1 // loop_footer
      %s17 = sadd.s32 1, %s13
    $region7: #{new_crf_depth_forward.1} parent=1 // loop_footer_branch
      %12 = sbr.rel target = $region3
    $region8: #{new_crf_depth_forward.1} parent=1 // loop_exit
      _
    %893 = vsyncpa [#allocation3], 1
    %s894 = scalar_lea.sflag [#allocation3], 1
    %895 = vsyncpa %s894, 1
    %896 = vsyncpa [#allocation4], 1
    %s897 = scalar_lea.sflag [#allocation4], 1
    %898 = vsyncpa %s897, 1

</llo_original>
